<compile_context>
chip_gen: v7x
topology: tpu7x:2x2x1
jax: 0.10.0
libtpu: 0.0.40
codegen_flags: <defaults>
</compile_context>

<pallas_src>
import functools

import jax
import jax.numpy as jnp
from jax.experimental import pallas as pl
from jax.experimental.pallas import tpu as pltpu


def _focal_loss_kernel(x_ref, t_ref, a_ref, o_ref, *, gamma, n_total, tile_n):
    # x_ref: (TILE_N, C) logits, native dtype (VMEM)
    # t_ref: (TILE_N, 1) int32 targets       (VMEM)
    # a_ref: (1, C) f32 per-class alpha      (VMEM)
    # o_ref: (1, 8, 128) f32 per-tile partial sum, broadcast over the block
    x = x_ref[...].astype(jnp.float32)            # cast after load (bf16 ok)
    t = t_ref[...]                                # (TILE_N, 1) int32
    a = a_ref[...].astype(jnp.float32)            # (1, C)
    tn, c = x.shape

    # One-hot selection mask via iota compare (== scatter_(1, ids, 1.0)).
    ids = jax.lax.broadcasted_iota(jnp.int32, (tn, c), 1)
    onehot = ids == t                             # (TILE_N, C) bool

    # Log-softmax at the target class (numerically stable, no full-tile P).
    m = jnp.max(x, axis=1, keepdims=True)                         # (TILE_N, 1)
    se = jnp.sum(jnp.exp(x - m), axis=1, keepdims=True)           # (TILE_N, 1)
    x_sel = jnp.sum(jnp.where(onehot, x, 0.0), axis=1, keepdims=True)
    log_p = x_sel - m - jnp.log(se)                               # (TILE_N, 1)
    probs = jnp.exp(log_p)                                        # (TILE_N, 1)

    # alpha[targets[n]]
    alpha_sel = jnp.sum(jnp.where(onehot, a, 0.0), axis=1, keepdims=True)

    # (1 - p)^gamma : specialize small integer gamma to VPU multiplies.
    one_minus = 1.0 - probs
    g = float(gamma)
    if g.is_integer() and 0.0 <= g <= 4.0:
        gi = int(g)
        if gi == 0:
            w = jnp.ones_like(one_minus)
        else:
            w = one_minus
            for _ in range(gi - 1):
                w = w * one_minus
    else:
        w = jnp.power(one_minus, jnp.float32(g))

    per_row = -alpha_sel * w * log_p                              # (TILE_N, 1)

    # Zero out padded rows (global row index >= true N).
    row0 = pl.program_id(0) * tile_n
    rows = row0 + jax.lax.broadcasted_iota(jnp.int32, (tn, 1), 0)
    per_row = jnp.where(rows < n_total, per_row, 0.0)

    partial = jnp.sum(per_row, axis=0, keepdims=True)             # (1, 1)
    o_ref[...] = jnp.broadcast_to(partial.reshape(1, 1, 1), (1, 8, 128))


def _choose_tile_n(n, c, itemsize):
    # Per-tile live set ~= double-buffered logits (2 * itemsize B/elem) plus
    # ~4 full-tile f32 temporaries.  Keep it well under the 32 MiB scoped-VMEM
    # default so it is safe on v7x (64 MiB physical) as well as v5e/v6e.
    budget_bytes = 12 * 1024 * 1024
    per_row_bytes = c * (2 * itemsize + 4 * 4)
    rows = max(8, min(1024, budget_bytes // max(1, per_row_bytes)))
    rows = (rows // 8) * 8
    n8 = ((n + 7) // 8) * 8
    return max(8, min(rows, n8))


def focal_loss(logits, targets, alpha=None, gamma=2.0, size_average=True):
    """Pallas TPU implementation of o_FocalLoss.forward. Returns a scalar."""
    N, C = logits.shape
    if alpha is None:
        alpha = jnp.ones((C,), dtype=jnp.float32)   # torch.ones(class_num, 1)
    a2 = jnp.asarray(alpha, dtype=jnp.float32).reshape(1, C)

    tile_n = _choose_tile_n(N, C, jnp.dtype(logits.dtype).itemsize)
    num_tiles = pl.cdiv(N, tile_n)
    n_pad = num_tiles * tile_n

    x = logits                                       # keep native dtype
    t = jnp.asarray(targets, dtype=jnp.int32)
    if n_pad != N:
        x = jnp.pad(x, ((0, n_pad - N), (0, 0)))
        t = jnp.pad(t, (0, n_pad - N))
    t2 = t.reshape(n_pad, 1)

    kernel = functools.partial(
        _focal_loss_kernel, gamma=float(gamma), n_total=int(N), tile_n=int(tile_n)
    )

    partials = pl.pallas_call(
        kernel,
        out_shape=jax.ShapeDtypeStruct((num_tiles, 8, 128), jnp.float32),
        grid=(num_tiles,),
        in_specs=[
            pl.BlockSpec((tile_n, C), lambda i: (i, 0)),   # logits tile
            pl.BlockSpec((tile_n, 1), lambda i: (i, 0)),   # targets tile
            pl.BlockSpec((1, C), lambda i: (0, 0)),        # alpha (resident)
        ],
        out_specs=pl.BlockSpec((1, 8, 128), lambda i: (i, 0, 0)),
        compiler_params=pltpu.CompilerParams(
            dimension_semantics=("parallel",),
            vmem_limit_bytes=32 * 1024 * 1024,
        ),
    )(x, t2, a2)

    total = jnp.sum(partials[:, 0, 0])
    if size_average:
        return total / jnp.float32(N)
    return total


def _reference_focal_loss(logits, targets, alpha, gamma=2.0, size_average=True):
    """Pure-JAX reference mirroring the PyTorch module."""
    p = jax.nn.softmax(logits.astype(jnp.float32), axis=1)
    probs = jnp.take_along_axis(p, targets[:, None], axis=1)      # (N, 1)
    alpha_sel = jnp.asarray(alpha, jnp.float32).reshape(-1)[targets][:, None]
    log_p = jnp.log(probs)
    batch_loss = -alpha_sel * jnp.power(1.0 - probs, gamma) * log_p
    return jnp.mean(batch_loss) if size_average else jnp.sum(batch_loss)


if __name__ == "__main__":
    key = jax.random.PRNGKey(0)
    N, C = 8, 16  # batch, num_classes

    k1, k2 = jax.random.split(key)
    logits = jax.random.normal(k1, (N, C), dtype=jnp.float32)
    targets = jax.random.randint(k2, (N,), 0, C, dtype=jnp.int32)
    alpha = jnp.linspace(0.5, 1.5, C).astype(jnp.float32)  # non-trivial alpha

    loss = focal_loss(logits, targets, alpha, gamma=2.0, size_average=True)
    loss = jax.block_until_ready(loss)

    ref = _reference_focal_loss(logits, targets, alpha, gamma=2.0, size_average=True)
    assert jnp.allclose(loss, ref, rtol=1e-5, atol=1e-5), (loss, ref)

    print("KERNEL_OK")
</pallas_src>

<mosaic_0001>
module attributes {stable_mosaic.version = 11 : i64} {
  func.func @_focal_loss_kernel(%arg0: i32, %arg1: memref<8x16xf32, #tpu.memory_space<vmem>>, %arg2: memref<8x1xi32, #tpu.memory_space<vmem>>, %arg3: memref<1x16xf32, #tpu.memory_space<vmem>>, %arg4: memref<1x8x128xf32, #tpu.memory_space<vmem>>) attributes {dimension_semantics = [#tpu.dimension_semantics<parallel>], iteration_bounds = array<i64: 1>, scalar_prefetch = 0 : i64, scratch_operands = 0 : i64, tpu.core_type = #tpu.core_type<tc>, window_params = [{transform_indices = @transform_0, window_bounds = array<i64: 8, 16>}, {transform_indices = @transform_1, window_bounds = array<i64: 8, 1>}, {pipeline_mode = #tpu.pipeline_mode<synchronous>, transform_indices = @transform_2, window_bounds = array<i64: 1, 16>}, {transform_indices = @transform_3, window_bounds = array<i64: 1, 8, 128>}]} {
    %c0 = arith.constant 0 : index
    %c0_0 = arith.constant 0 : index
    %0 = vector.load %arg1[%c0, %c0_0] : memref<8x16xf32, #tpu.memory_space<vmem>>, vector<8x16xf32>
    %c0_1 = arith.constant 0 : index
    %c0_2 = arith.constant 0 : index
    %1 = vector.load %arg2[%c0_1, %c0_2] : memref<8x1xi32, #tpu.memory_space<vmem>>, vector<8x1xi32>
    %c0_3 = arith.constant 0 : index
    %c0_4 = arith.constant 0 : index
    %2 = vector.load %arg3[%c0_3, %c0_4] : memref<1x16xf32, #tpu.memory_space<vmem>>, vector<1x16xf32>
    %3 = tpu.iota {dimensions = array<i32: 1>} : vector<8x16xi32>
    %4 = vector.broadcast %1 : vector<8x1xi32> to vector<8x16xi32>
    %5 = arith.cmpi eq, %3, %4 : vector<8x16xi32>
    %cst = arith.constant dense<0xFF800000> : vector<8xf32>
    %6 = vector.multi_reduction <maximumf>, %0, %cst [1] : vector<8x16xf32> to vector<8xf32>
    %7 = vector.shape_cast %6 : vector<8xf32> to vector<8x1xf32>
    %8 = vector.broadcast %7 : vector<8x1xf32> to vector<8x16xf32>
    %9 = arith.subf %0, %8 : vector<8x16xf32>
    %10 = math.exp %9 : vector<8x16xf32>
    %cst_5 = arith.constant dense<0.000000e+00> : vector<8xf32>
    %11 = vector.multi_reduction <add>, %10, %cst_5 [1] : vector<8x16xf32> to vector<8xf32>
    %12 = vector.shape_cast %11 : vector<8xf32> to vector<8x1xf32>
    %cst_6 = arith.constant 0.000000e+00 : f32
    %13 = vector.broadcast %cst_6 : f32 to vector<8x16xf32>
    %14 = arith.select %5, %0, %13 : vector<8x16xi1>, vector<8x16xf32>
    %cst_7 = arith.constant dense<0.000000e+00> : vector<8xf32>
    %15 = vector.multi_reduction <add>, %14, %cst_7 [1] : vector<8x16xf32> to vector<8xf32>
    %16 = vector.shape_cast %15 : vector<8xf32> to vector<8x1xf32>
    %17 = arith.subf %16, %7 : vector<8x1xf32>
    %18 = math.log %12 : vector<8x1xf32>
    %19 = arith.subf %17, %18 : vector<8x1xf32>
    %20 = math.exp %19 : vector<8x1xf32>
    %cst_8 = arith.constant 0.000000e+00 : f32
    %21 = vector.shape_cast %2 : vector<1x16xf32> to vector<1x16xf32>
    %22 = vector.broadcast %21 : vector<1x16xf32> to vector<8x16xf32>
    %23 = vector.broadcast %cst_8 : f32 to vector<8x16xf32>
    %24 = arith.select %5, %22, %23 : vector<8x16xi1>, vector<8x16xf32>
    %cst_9 = arith.constant dense<0.000000e+00> : vector<8xf32>
    %25 = vector.multi_reduction <add>, %24, %cst_9 [1] : vector<8x16xf32> to vector<8xf32>
    %26 = vector.shape_cast %25 : vector<8xf32> to vector<8x1xf32>
    %cst_10 = arith.constant 1.000000e+00 : f32
    %27 = vector.broadcast %cst_10 : f32 to vector<8x1xf32>
    %28 = arith.subf %27, %20 : vector<8x1xf32>
    %29 = arith.mulf %28, %28 : vector<8x1xf32>
    %cst_11 = arith.constant 0.000000e+00 : f32
    %30 = vector.broadcast %cst_11 : f32 to vector<8x1xf32>
    %31 = arith.subf %30, %26 : vector<8x1xf32>
    %32 = arith.mulf %31, %29 : vector<8x1xf32>
    %33 = arith.mulf %32, %19 : vector<8x1xf32>
    %c8_i32 = arith.constant 8 : i32
    %34 = arith.muli %arg0, %c8_i32 : i32
    %35 = tpu.iota {dimensions = array<i32: 0>} : vector<8x1xi32>
    %36 = vector.broadcast %34 : i32 to vector<8x1xi32>
    %37 = arith.addi %36, %35 : vector<8x1xi32>
    %c8_i32_12 = arith.constant 8 : i32
    %38 = vector.broadcast %c8_i32_12 : i32 to vector<8x1xi32>
    %39 = arith.cmpi slt, %37, %38 : vector<8x1xi32>
    %cst_13 = arith.constant 0.000000e+00 : f32
    %40 = vector.broadcast %cst_13 : f32 to vector<8x1xf32>
    %41 = arith.select %39, %33, %40 : vector<8x1xi1>, vector<8x1xf32>
    %cst_14 = arith.constant dense<0.000000e+00> : vector<1xf32>
    %42 = vector.multi_reduction <add>, %41, %cst_14 [0] : vector<8x1xf32> to vector<1xf32>
    %43 = vector.shape_cast %42 : vector<1xf32> to vector<1x1xf32>
    %44 = vector.shape_cast %43 : vector<1x1xf32> to vector<1x1x1xf32>
    %45 = vector.shape_cast %44 : vector<1x1x1xf32> to vector<1x1x1xf32>
    %46 = vector.broadcast %45 : vector<1x1x1xf32> to vector<1x8x128xf32>
    %c0_15 = arith.constant 0 : index
    %c0_16 = arith.constant 0 : index
    %c0_17 = arith.constant 0 : index
    %47 = vector.load %arg4[%c0_15, %c0_16, %c0_17] : memref<1x8x128xf32, #tpu.memory_space<vmem>>, vector<1x8x128xf32>
    tpu.vector_store %arg4[%c0_15, %c0_16, %c0_17], %46 {strides = array<i32>} : memref<1x8x128xf32, #tpu.memory_space<vmem>>, vector<1x8x128xf32>,
    return
  }
  func.func @transform_0(%arg0: i32) -> (i32, i32) {
    %c0_i32 = arith.constant 0 : i32
    %c0_i32_0 = arith.constant 0 : i32
    return %arg0, %c0_i32 : i32, i32
  }
  func.func @transform_1(%arg0: i32) -> (i32, i32) {
    %c0_i32 = arith.constant 0 : i32
    %c0_i32_0 = arith.constant 0 : i32
    return %arg0, %c0_i32 : i32, i32
  }
  func.func @transform_2(%arg0: i32) -> (i32, i32) {
    %c0_i32 = arith.constant 0 : i32
    %c0_i32_0 = arith.constant 0 : i32
    %c0_i32_1 = arith.constant 0 : i32
    return %c0_i32, %c0_i32_0 : i32, i32
  }
  func.func @transform_3(%arg0: i32) -> (i32, i32, i32) {
    %c0_i32 = arith.constant 0 : i32
    %c0_i32_0 = arith.constant 0 : i32
    %c0_i32_1 = arith.constant 0 : i32
    return %arg0, %c0_i32, %c0_i32_0 : i32, i32, i32
  }
}

</mosaic_0001>

<llo_original>
// kernel: tpu_custom_call.1
$region0: #{tpu_custom_call.1}
  #allocation0 [shape = 'u32[]', space=smem, size = 0x4, offset = 0x4, fixed_abs, tag = 'smem constant byte address 0x4 - core index']
  #allocation1 [shape = 'u32[144,128]{1,0:T(1,128)}', space=vmem, size = 0x12000, scoped, tag = 'internal scratch']
  %s0 = inlined_call_operand.vmem [shape: f32[8,16], index: 0, kind: input, shape index: {}]
  %s1 = inlined_call_operand.vmem [shape: s32[8,1], index: 1, kind: input, shape index: {}]
  %s2 = inlined_call_operand.vmem [shape: f32[1,16], index: 2, kind: input, shape index: {}]
  %s3 = inlined_call_operand.hbm [shape: f32[1,8,128], index: 3, kind: output, shape index: {}]
  %s4 = sld [smem:[#allocation0]]
  $region22: #{tpu_custom_call.1} parent=0
    _
  %s6 = ssub.s32 1, %s4
  %s7 = scalar_select 0, %s6, %s4
  $region1: #{tpu_custom_call.1} parent=0
    #allocation2 [shape = 'u8[4096]{0}', space=vmem, size = 0x1000, scoped, tag = 'output window, operand 0, single buffered']
    #allocation3 [shape = 's32[1]{0}', space=sflag, size = 0x4, scoped, tag = 'scoped memory for tpu_custom_call.1']
    %8 = vsyncpa [#allocation3], 0
    // Predicated region
    $region2: #{tpu_custom_call.1} parent=1 // pred_check
      _
    $region3: #{tpu_custom_call.1} parent=1 // pred_check_branch
      %10 = sbr.rel (0) target = $region5
    $region4: #{tpu_custom_call.1} parent=1 // pred_region
      _
    $region5: #{tpu_custom_call.1} parent=1 // pred_fallthru
      _
    // Predicated region
    $region6: #{tpu_custom_call.1} parent=1 // pred_check
      _
    $region7: #{tpu_custom_call.1} parent=1 // pred_check_branch
      %12 = sbr.rel (0) target = $region9
    $region8: #{tpu_custom_call.1} parent=1 // pred_region
      _
    $region9: #{tpu_custom_call.1} parent=1 // pred_fallthru
      _
    // Predicated region
    $region10: #{tpu_custom_call.1} parent=1 // pred_check
      _
    $region11: #{tpu_custom_call.1} parent=1 // pred_check_branch
      %14 = sbr.rel (0) target = $region13
    $region12: #{tpu_custom_call.1} parent=1 // pred_region
      _
    $region13: #{tpu_custom_call.1} parent=1 // pred_fallthru
      _
    %v15 = vld [vmem:[%s0] sm:$0xff]
    %v16 = vld [vmem:[%s1] sm:$0xff]
    %v17 = vld [vmem:[%s2] sm:$0x1]
    %v18 = vlaneseq
    %v19 = vand.u32 %v18, 127
    %20 = vset.pattern.permute.xlu0 0
    %21 = vperm.xlu0 %20, %v16
    %v22 = vpop.permute.xlu0 %21
    %vm23 = vcmp.eq.s32.totalorder %v19, %v22
    %vm24 = vcmask 130048
    %v25 = vsel %vm24, %v15, -inf
    %26 = vmax.xlane.f32.xlu0 %v25
    %v27 = vpop.xlane.xlu0 %26
    %v28 = vsub.f32 %v15, %v27
    %v29 = vmul.f32 %v28, 1.442695
    %v30 = vpow.pop %v29
    %v31 = vsel %vm24, %v30, 0.0
    %32 = vadd.xlane.f32.xlu0 %v31
    %v33 = vpop.xlane.xlu0 %32
    %v34 = vsel %vm23, %v15, 0.0
    %v35 = vsel %vm24, %v34, 0.0
    %36 = vadd.xlane.f32.xlu0 %v35
    %v37 = vpop.xlane.xlu0 %36
    %v38 = vsub.f32 %v37, %v27
    %v39 = vlog2.pop %v33
    %v40 = vmul.f32 %v39, 0.6931472
    %v41 = vsub.f32 %v38, %v40
    %v42 = vmul.f32 %v41, 1.442695
    %v43 = vpow.pop %v42
    %v45 = vlaneseq
    %v46 = vshrl.u32 %v45, 7
    %v47 = vsub.s32 0, %v46
    %v48 = vrot.slane %v17, %v47
    %v50 = vsel %vm23, %v48, 0.0
    %v51 = vsel %vm24, %v50, 0.0
    %52 = vadd.xlane.f32.xlu0 %v51
    %v53 = vpop.xlane.xlu0 %52
    %v54 = vsub.f32 1.0, %v43
    %v55 = vmul.f32 %v54, %v54
    %v56 = vsub.f32 0.0, %v53
    %v57 = vmul.f32 %v56, %v55
    %v58 = vmul.f32 %v57, %v41
    %s59 = smul.u32 0, 8
    %v60 = vlaneseq
    %v61 = vshrl.u32 %v60, 7
    %v62 = vstv %s59
    %v63 = vadd.s32 %v62, %v61
    %vm64 = vcmp.lt.s32.totalorder %v63, 8
    %v65 = vsel %vm64, %v58, 0.0
    %v66 = vrot.slane %v65, 4
    %v67 = vadd.f32 %v65, %v66
    %v68 = vrot.slane %v67, 2
    %v69 = vadd.f32 %v67, %v68
    %v70 = vrot.slane %v69, 1
    %v71 = vadd.f32 %v69, %v70
    %72 = vst [vmem:[#allocation2] sm:$0xff] %v71
    // Predicated region
    $region14: #{tpu_custom_call.1} parent=1 // pred_check
      _
    $region15: #{tpu_custom_call.1} parent=1 // pred_check_branch
      %74 = sbr.rel (0) target = $region17
    $region16: #{tpu_custom_call.1} parent=1 // pred_region
      %s76 = ssub.s32 128, 128
      %77 = vsyncadd [#allocation3], %s76
      %s79 = sshll.u32 [#allocation2], 4
      %s80 = int_to_ptr.vmem [resolvable:$true] %s79
      %82 = dma.vmem_to_hbm [thread:$0]  %s80, 128, %s3, [#allocation3]
    $region17: #{tpu_custom_call.1} parent=1 // pred_fallthru
      _
    // Predicated region
    $region18: #{tpu_custom_call.1} parent=1 // pred_check
      _
    $region19: #{tpu_custom_call.1} parent=1 // pred_check_branch
      %84 = sbr.rel (0) target = $region21
    $region20: #{tpu_custom_call.1} parent=1 // pred_region
      %85 = dma.done [#allocation3], 128
    $region21: #{tpu_custom_call.1} parent=1 // pred_fallthru
      _
    %86 = vsyncpa [#allocation3], 1

</llo_original>
